<compile_context>
chip_gen: v5e
topology: v5e:2x2
jax: 0.10.0
libtpu: 0.0.40
codegen_flags: <defaults>
</compile_context>

<pallas_src>
import functools

import jax
import jax.numpy as jnp
from jax.experimental import pallas as pl
from jax.experimental.pallas import tpu as pltpu


def _ls_ce_kernel(logits_ref, tgt_ref, out_ref, m_sc, l_sc, w_sc, *,
                  smooth_ratio, num_classes, class_tile, mask_classes):
    """Grid step (i, j): rows tile i, class tile j.

    Accumulates per-row running max / sum-exp / weighted-logit-sum across the
    class axis; the last class step writes the per-row loss contribution
    (before the final -sum/N) to out_ref.
    """
    j = pl.program_id(1)

    @pl.when(j == 0)
    def _init():
        m_sc[...] = jnp.full(m_sc.shape, -jnp.inf, dtype=jnp.float32)
        l_sc[...] = jnp.zeros(l_sc.shape, dtype=jnp.float32)
        w_sc[...] = jnp.zeros(w_sc.shape, dtype=jnp.float32)

    x_raw = logits_ref[...]                                    # (tm, tc) native dtype
    x = x_raw.astype(jnp.float32)                              # (tm, tc) f32

    # (1, tc) local column index; compare against tile-shifted targets / bound
    # instead of materializing a full (tm, tc) global iota every step.
    col_local = jax.lax.broadcasted_iota(jnp.int32, (1, class_tile), 1)
    tgt_local = tgt_ref[...] - j * class_tile                  # (tm, 1) int32

    if mask_classes:
        valid = col_local < (num_classes - j * class_tile)     # (1, tc) bool
        x_exp = jnp.where(valid, x, -jnp.inf)   # padded lanes never win max / exp->0
        x_sum = jnp.where(valid, x, 0.0)        # padded lanes contribute 0 (NaN-safe)
        m_tile = jnp.max(x_exp, axis=-1, keepdims=True)        # (tm, 1)
    else:
        x_exp = x
        x_sum = x
        # max is exact in the native dtype; bf16 packs 2x per vreg -> 2x VPU.
        m_tile = jnp.max(x_raw, axis=-1, keepdims=True).astype(jnp.float32)

    # Online log-sum-exp across class tiles.
    m_new = jnp.maximum(m_sc[...], m_tile)
    alpha = jnp.exp(m_sc[...] - m_new)
    l_sc[...] = alpha * l_sc[...] + jnp.sum(jnp.exp(x_exp - m_new),
                                            axis=-1, keepdims=True)
    m_sc[...] = m_new

    # Fused weighted-logit accumulator:  w_i += sum_j q_ij * x_ij
    # q_ij = (1 - smooth + v) on the target column, v elsewhere.
    v = smooth_ratio / num_classes
    hi = 1.0 - smooth_ratio + v
    weight = jnp.where(col_local == tgt_local, hi, v)          # (tm, tc)
    w_sc[...] += jnp.sum(x_sum * weight, axis=-1, keepdims=True)

    @pl.when(j == pl.num_programs(1) - 1)
    def _finalize():
        lse = m_sc[...] + jnp.log(l_sc[...])                   # (tm, 1)
        sum_q = num_classes * v + (1.0 - smooth_ratio)         # python double, ~1.0
        out_ref[...] = w_sc[...] - sum_q * lse


def _round_down(x, m):
    return (x // m) * m


def label_smooth_ce_loss(logits, targets, *, smooth_ratio,
                         row_tile=None, class_tile=None):
    """logits: (N, C) float (f32 or bf16); targets: (N,) int. Returns f32 scalar."""
    n, c = logits.shape
    itemsize = jnp.dtype(logits.dtype).itemsize

    # ---- hardware-aware VMEM budget (64 MiB on v7x, 128 MiB on v5e/v6e) ----
    try:
        vmem_cap = int(pltpu.get_tpu_info().vmem_capacity_bytes)
    except Exception:  # conservative fallback if the query is unavailable
        vmem_cap = 64 << 20
    # Budget for the double-buffered logits tile (both buffers combined):
    # ~12.8 MiB on v7x, ~25.6 MiB on v5e/v6e.
    tile_budget = max(8 << 20, vmem_cap // 5)

    # ---- class tiling: single tile when it fits, else lane-dense 4096 chunks ----
    if class_tile is None:
        if c <= 4096:
            class_tile = c
        elif c <= 8192 and vmem_cap >= (96 << 20):
            # v5e/v6e (128 MiB VMEM): one class tile avoids the online-LSE
            # rescale and halves grid-step overhead for mid-size vocabularies.
            class_tile = c
        else:
            class_tile = 4096
    class_tile = min(class_tile, c)
    if class_tile != c:
        class_tile = max(128, _round_down(class_tile, 128))
    num_class_tiles = pl.cdiv(c, class_tile)
    mask_classes = (c % class_tile) != 0

    # ---- row tiling: budgeted, then clamped so >= 2 row tiles exist ----
    auto_row = row_tile is None
    if auto_row:
        tc_pad = max(128, ((class_tile + 127) // 128) * 128)
        rows = tile_budget // (2 * tc_pad * itemsize)
        row_tile = max(8, min(512, _round_down(rows, 8)))
        if n >= 16:
            # Guarantee at least 2 row tiles so the "parallel" row axis can
            # shard across both v7x TensorCores (no-op for v5e/v6e).
            row_tile = min(row_tile, max(8, _round_down(pl.cdiv(n, 2), 8)))
    row_tile = min(row_tile, n)
    if n >= 8:
        row_tile = max(8, _round_down(row_tile, 8))
    num_row_tiles = pl.cdiv(n, row_tile)

    # ---- VMEM limit: sized to the tiles, capped at 75% of physical VMEM ----
    tc_pad = ((class_tile + 127) // 128) * 128
    tm_pad = ((row_tile + 7) // 8) * 8
    logits_buf_bytes = 2 * tm_pad * tc_pad * itemsize          # double-buffered input
    vmem_limit = int(min(int(0.75 * vmem_cap),
                         max(32 << 20, 3 * logits_buf_bytes + (8 << 20))))

    targets2d = targets.astype(jnp.int32).reshape(n, 1)

    kernel = functools.partial(
        _ls_ce_kernel,
        smooth_ratio=float(smooth_ratio),
        num_classes=c,
        class_tile=class_tile,
        mask_classes=mask_classes,
    )

    # TODO(synk): for tiny C (<<128) lanes are underutilized; a row->lane fold
    # in the wrapper could improve DMA/VPU efficiency for that corner case.
    per_row = pl.pallas_call(
        kernel,
        out_shape=jax.ShapeDtypeStruct((n, 1), jnp.float32),
        grid_spec=pltpu.PrefetchScalarGridSpec(
            num_scalar_prefetch=0,
            grid=(num_row_tiles, num_class_tiles),
            in_specs=[
                pl.BlockSpec((row_tile, class_tile), lambda i, j: (i, j)),  # logits
                pl.BlockSpec((row_tile, 1), lambda i, j: (i, 0)),           # targets
            ],
            out_specs=pl.BlockSpec((row_tile, 1), lambda i, j: (i, 0)),     # per-row
            scratch_shapes=[
                pltpu.VMEM((row_tile, 1), jnp.float32),   # running max
                pltpu.VMEM((row_tile, 1), jnp.float32),   # running sum(exp)
                pltpu.VMEM((row_tile, 1), jnp.float32),   # running weighted-logit sum
            ],
        ),
        compiler_params=pltpu.CompilerParams(
            dimension_semantics=("parallel", "arbitrary"),
            vmem_limit_bytes=vmem_limit,
        ),
    )(logits, targets2d)

    # Tiny (N,) reduction + scale done in JAX so the batch axis stays parallel.
    return -(jnp.sum(per_row) / n)


def _reference(logits, targets, smooth_ratio):
    n, c = logits.shape
    v = smooth_ratio / c
    one_hot = jnp.full((n, c), v, dtype=jnp.float32)
    one_hot = one_hot.at[jnp.arange(n), targets].set(1.0 - smooth_ratio + v)
    logsoft = jax.nn.log_softmax(logits.astype(jnp.float32), axis=1)
    return -jnp.sum(logsoft * one_hot) / n


if __name__ == "__main__":
    key = jax.random.PRNGKey(0)
    k1, k2, k3, k4, k5, k6 = jax.random.split(key, 6)

    # Case 1: small shapes matching the module spec (single-tile path).
    N1, C1, sr1 = 8, 32, 0.1
    logits1 = jax.random.normal(k1, (N1, C1), dtype=jnp.float32)
    targets1 = jax.random.randint(k2, (N1,), 0, C1, dtype=jnp.int32)
    loss1 = jax.block_until_ready(
        label_smooth_ce_loss(logits1, targets1, smooth_ratio=sr1))
    ref1 = _reference(logits1, targets1, sr1)
    assert jnp.allclose(loss1, ref1, atol=1e-4, rtol=1e-4), (loss1, ref1)

    # Case 2: exercises row tiling, class tiling (online LSE) and class padding.
    N2, C2, sr2 = 16, 320, 0.2
    logits2 = jax.random.normal(k3, (N2, C2), dtype=jnp.float32) * 3.0
    targets2 = jax.random.randint(k4, (N2,), 0, C2, dtype=jnp.int32)
    loss2 = jax.block_until_ready(
        label_smooth_ce_loss(logits2, targets2, smooth_ratio=sr2,
                             row_tile=8, class_tile=128))
    ref2 = _reference(logits2, targets2, sr2)
    assert jnp.allclose(loss2, ref2, atol=1e-4, rtol=1e-4), (loss2, ref2)

    # Case 3: bf16 logits (exercises the native-dtype max fast path).
    N3, C3, sr3 = 8, 128, 0.1
    logits3 = (jax.random.normal(k5, (N3, C3), dtype=jnp.float32) * 2.0
               ).astype(jnp.bfloat16)
    targets3 = jax.random.randint(k6, (N3,), 0, C3, dtype=jnp.int32)
    loss3 = jax.block_until_ready(
        label_smooth_ce_loss(logits3, targets3, smooth_ratio=sr3))
    ref3 = _reference(logits3, targets3, sr3)
    assert jnp.allclose(loss3, ref3, atol=1e-3, rtol=1e-3), (loss3, ref3)

    print("KERNEL_OK")
</pallas_src>

<mosaic_0001>
module attributes {stable_mosaic.version = 11 : i64} {
  func.func @_ls_ce_kernel(%arg0: i32, %arg1: i32, %arg2: memref<8x32xf32, #tpu.memory_space<vmem>>, %arg3: memref<8x1xi32, #tpu.memory_space<vmem>>, %arg4: memref<8x1xf32, #tpu.memory_space<vmem>>, %arg5: memref<8x1xf32, #tpu.memory_space<vmem>>, %arg6: memref<8x1xf32, #tpu.memory_space<vmem>>, %arg7: memref<8x1xf32, #tpu.memory_space<vmem>>) attributes {dimension_semantics = [#tpu.dimension_semantics<parallel>, #tpu.dimension_semantics<arbitrary>], iteration_bounds = array<i64: 1, 1>, scalar_prefetch = 0 : i64, scratch_operands = 3 : i64, tpu.core_type = #tpu.core_type<tc>, window_params = [{transform_indices = @transform_0, window_bounds = array<i64: 8, 32>}, {transform_indices = @transform_1, window_bounds = array<i64: 8, 1>}, {transform_indices = @transform_2, window_bounds = array<i64: 8, 1>}]} {
    %c0_i32 = arith.constant 0 : i32
    %0 = arith.cmpi eq, %arg1, %c0_i32 : i32
    %1 = arith.extui %0 : i1 to i32
    %c0_i32_0 = arith.constant 0 : i32
    %2 = arith.cmpi ne, %1, %c0_i32_0 : i32
    scf.if %2 {
      %cst_24 = arith.constant 0xFF800000 : f32
      %41 = vector.broadcast %cst_24 : f32 to vector<8x1xf32>
      %c0_25 = arith.constant 0 : index
      %c0_26 = arith.constant 0 : index
      %42 = vector.load %arg5[%c0_25, %c0_26] : memref<8x1xf32, #tpu.memory_space<vmem>>, vector<8x1xf32>
      tpu.vector_store %arg5[%c0_25, %c0_26], %41 {strides = array<i32>} : memref<8x1xf32, #tpu.memory_space<vmem>>, vector<8x1xf32>,
      %cst_27 = arith.constant 0.000000e+00 : f32
      %43 = vector.broadcast %cst_27 : f32 to vector<8x1xf32>
      %c0_28 = arith.constant 0 : index
      %c0_29 = arith.constant 0 : index
      %44 = vector.load %arg6[%c0_28, %c0_29] : memref<8x1xf32, #tpu.memory_space<vmem>>, vector<8x1xf32>
      tpu.vector_store %arg6[%c0_28, %c0_29], %43 {strides = array<i32>} : memref<8x1xf32, #tpu.memory_space<vmem>>, vector<8x1xf32>,
      %cst_30 = arith.constant 0.000000e+00 : f32
      %45 = vector.broadcast %cst_30 : f32 to vector<8x1xf32>
      %c0_31 = arith.constant 0 : index
      %c0_32 = arith.constant 0 : index
      %46 = vector.load %arg7[%c0_31, %c0_32] : memref<8x1xf32, #tpu.memory_space<vmem>>, vector<8x1xf32>
      tpu.vector_store %arg7[%c0_31, %c0_32], %45 {strides = array<i32>} : memref<8x1xf32, #tpu.memory_space<vmem>>, vector<8x1xf32>,
    } else {
    }
    %c0 = arith.constant 0 : index
    %c0_1 = arith.constant 0 : index
    %3 = vector.load %arg2[%c0, %c0_1] : memref<8x32xf32, #tpu.memory_space<vmem>>, vector<8x32xf32>
    %4 = tpu.iota {dimensions = array<i32: 1>} : vector<1x32xi32>
    %c0_2 = arith.constant 0 : index
    %c0_3 = arith.constant 0 : index
    %5 = vector.load %arg3[%c0_2, %c0_3] : memref<8x1xi32, #tpu.memory_space<vmem>>, vector<8x1xi32>
    %c32_i32 = arith.constant 32 : i32
    %6 = arith.muli %arg1, %c32_i32 : i32
    %7 = vector.broadcast %6 : i32 to vector<8x1xi32>
    %8 = arith.subi %5, %7 : vector<8x1xi32>
    %cst = arith.constant dense<0xFF800000> : vector<8xf32>
    %9 = vector.multi_reduction <maximumf>, %3, %cst [1] : vector<8x32xf32> to vector<8xf32>
    %10 = vector.shape_cast %9 : vector<8xf32> to vector<8x1xf32>
    %c0_4 = arith.constant 0 : index
    %c0_5 = arith.constant 0 : index
    %11 = vector.load %arg5[%c0_4, %c0_5] : memref<8x1xf32, #tpu.memory_space<vmem>>, vector<8x1xf32>
    %12 = arith.maximumf %11, %10 : vector<8x1xf32>
    %c0_6 = arith.constant 0 : index
    %c0_7 = arith.constant 0 : index
    %13 = vector.load %arg5[%c0_6, %c0_7] : memref<8x1xf32, #tpu.memory_space<vmem>>, vector<8x1xf32>
    %14 = arith.subf %13, %12 : vector<8x1xf32>
    %15 = math.exp %14 : vector<8x1xf32>
    %c0_8 = arith.constant 0 : index
    %c0_9 = arith.constant 0 : index
    %16 = vector.load %arg6[%c0_8, %c0_9] : memref<8x1xf32, #tpu.memory_space<vmem>>, vector<8x1xf32>
    %17 = arith.mulf %15, %16 : vector<8x1xf32>
    %18 = vector.broadcast %12 : vector<8x1xf32> to vector<8x32xf32>
    %19 = arith.subf %3, %18 : vector<8x32xf32>
    %20 = math.exp %19 : vector<8x32xf32>
    %cst_10 = arith.constant dense<0.000000e+00> : vector<8xf32>
    %21 = vector.multi_reduction <add>, %20, %cst_10 [1] : vector<8x32xf32> to vector<8xf32>
    %22 = vector.shape_cast %21 : vector<8xf32> to vector<8x1xf32>
    %23 = arith.addf %17, %22 : vector<8x1xf32>
    %c0_11 = arith.constant 0 : index
    %c0_12 = arith.constant 0 : index
    %24 = vector.load %arg6[%c0_11, %c0_12] : memref<8x1xf32, #tpu.memory_space<vmem>>, vector<8x1xf32>
    tpu.vector_store %arg6[%c0_11, %c0_12], %23 {strides = array<i32>} : memref<8x1xf32, #tpu.memory_space<vmem>>, vector<8x1xf32>,
    %c0_13 = arith.constant 0 : index
    %c0_14 = arith.constant 0 : index
    %25 = vector.load %arg5[%c0_13, %c0_14] : memref<8x1xf32, #tpu.memory_space<vmem>>, vector<8x1xf32>
    tpu.vector_store %arg5[%c0_13, %c0_14], %12 {strides = array<i32>} : memref<8x1xf32, #tpu.memory_space<vmem>>, vector<8x1xf32>,
    %26 = vector.broadcast %4 : vector<1x32xi32> to vector<8x32xi32>
    %27 = vector.broadcast %8 : vector<8x1xi32> to vector<8x32xi32>
    %28 = arith.cmpi eq, %26, %27 : vector<8x32xi32>
    %cst_15 = arith.constant 0.903124988 : f32
    %cst_16 = arith.constant 3.125000e-03 : f32
    %29 = vector.broadcast %cst_15 : f32 to vector<8x32xf32>
    %30 = vector.broadcast %cst_16 : f32 to vector<8x32xf32>
    %31 = arith.select %28, %29, %30 : vector<8x32xi1>, vector<8x32xf32>
    %c0_17 = arith.constant 0 : index
    %c0_18 = arith.constant 0 : index
    %32 = vector.load %arg7[%c0_17, %c0_18] : memref<8x1xf32, #tpu.memory_space<vmem>>, vector<8x1xf32>
    %33 = arith.mulf %3, %31 : vector<8x32xf32>
    %cst_19 = arith.constant dense<0.000000e+00> : vector<8xf32>
    %34 = vector.multi_reduction <add>, %33, %cst_19 [1] : vector<8x32xf32> to vector<8xf32>
    %35 = vector.shape_cast %34 : vector<8xf32> to vector<8x1xf32>
    %36 = arith.addf %32, %35 : vector<8x1xf32>
    %c0_20 = arith.constant 0 : index
    %c0_21 = arith.constant 0 : index
    %37 = vector.load %arg7[%c0_20, %c0_21] : memref<8x1xf32, #tpu.memory_space<vmem>>, vector<8x1xf32>
    tpu.vector_store %arg7[%c0_20, %c0_21], %36 {strides = array<i32>} : memref<8x1xf32, #tpu.memory_space<vmem>>, vector<8x1xf32>,
    %c0_i32_22 = arith.constant 0 : i32
    %38 = arith.cmpi eq, %arg1, %c0_i32_22 : i32
    %39 = arith.extui %38 : i1 to i32
    %c0_i32_23 = arith.constant 0 : i32
    %40 = arith.cmpi ne, %39, %c0_i32_23 : i32
    scf.if %40 {
      %c0_24 = arith.constant 0 : index
      %c0_25 = arith.constant 0 : index
      %41 = vector.load %arg5[%c0_24, %c0_25] : memref<8x1xf32, #tpu.memory_space<vmem>>, vector<8x1xf32>
      %c0_26 = arith.constant 0 : index
      %c0_27 = arith.constant 0 : index
      %42 = vector.load %arg6[%c0_26, %c0_27] : memref<8x1xf32, #tpu.memory_space<vmem>>, vector<8x1xf32>
      %43 = math.log %42 : vector<8x1xf32>
      %44 = arith.addf %41, %43 : vector<8x1xf32>
      %c0_28 = arith.constant 0 : index
      %c0_29 = arith.constant 0 : index
      %45 = vector.load %arg7[%c0_28, %c0_29] : memref<8x1xf32, #tpu.memory_space<vmem>>, vector<8x1xf32>
      %cst_30 = arith.constant 1.000000e+00 : f32
      %46 = vector.broadcast %cst_30 : f32 to vector<8x1xf32>
      %47 = arith.mulf %46, %44 : vector<8x1xf32>
      %48 = arith.subf %45, %47 : vector<8x1xf32>
      %c0_31 = arith.constant 0 : index
      %c0_32 = arith.constant 0 : index
      %49 = vector.load %arg4[%c0_31, %c0_32] : memref<8x1xf32, #tpu.memory_space<vmem>>, vector<8x1xf32>
      tpu.vector_store %arg4[%c0_31, %c0_32], %48 {strides = array<i32>} : memref<8x1xf32, #tpu.memory_space<vmem>>, vector<8x1xf32>,
    } else {
    }
    return
  }
  func.func @transform_0(%arg0: i32, %arg1: i32) -> (i32, i32) {
    %c0_i32 = arith.constant 0 : i32
    return %arg0, %arg1 : i32, i32
  }
  func.func @transform_1(%arg0: i32, %arg1: i32) -> (i32, i32) {
    %c0_i32 = arith.constant 0 : i32
    %c0_i32_0 = arith.constant 0 : i32
    return %arg0, %c0_i32 : i32, i32
  }
  func.func @transform_2(%arg0: i32, %arg1: i32) -> (i32, i32) {
    %c0_i32 = arith.constant 0 : i32
    %c0_i32_0 = arith.constant 0 : i32
    return %arg0, %c0_i32 : i32, i32
  }
}

</mosaic_0001>

<llo_original>
// kernel: tpu_custom_call.1
$region0: #{tpu_custom_call.1}
  #allocation0 [shape = 'u32[]', space=smem, size = 0x4, offset = 0x4, fixed_abs, tag = 'smem constant byte address 0x4 - core index']
  #allocation1 [shape = 'u32[72,128]{1,0:T(1,128)}', space=vmem, size = 0x9000, scoped, tag = 'internal scratch']
  #allocation2 [shape = 'f32[8,1]{1,0:T(8,128)}', space=vmem, size = 0x1000, scoped, tag = 'scratch operand']
  #allocation3 [shape = 'f32[8,1]{1,0:T(8,128)}', space=vmem, size = 0x1000, scoped, tag = 'scratch operand']
  #allocation4 [shape = 'f32[8,1]{1,0:T(8,128)}', space=vmem, size = 0x1000, scoped, tag = 'scratch operand']
  %s0 = inlined_call_operand.vmem [shape: f32[8,32], index: 0, kind: input, shape index: {}]
  %s1 = inlined_call_operand.vmem [shape: s32[8,1], index: 1, kind: input, shape index: {}]
  %s2 = inlined_call_operand.vmem [shape: f32[8,1], index: 2, kind: output, shape index: {}]
  %s3 = sld [smem:[#allocation0]]
  $region26: #{tpu_custom_call.1} parent=0
    _
  %s5 = ssub.s32 1, %s3
  %s6 = scalar_select 0, %s5, %s3
  // Predicated region
  $region2: #{tpu_custom_call.1} parent=0 // pred_check
    _
  $region3: #{tpu_custom_call.1} parent=0 // pred_check_branch
    %8 = sbr.rel (0) target = $region5
  $region4: #{tpu_custom_call.1} parent=0 // pred_region
    _
  $region5: #{tpu_custom_call.1} parent=0 // pred_fallthru
    _
  // Predicated region
  $region6: #{tpu_custom_call.1} parent=0 // pred_check
    _
  $region7: #{tpu_custom_call.1} parent=0 // pred_check_branch
    %10 = sbr.rel (0) target = $region9
  $region8: #{tpu_custom_call.1} parent=0 // pred_region
    _
  $region9: #{tpu_custom_call.1} parent=0 // pred_fallthru
    _
  %p11 = scmp.eq.s32.totalorder 0, 0
  // Predicated region
  $region10: #{tpu_custom_call.1} parent=0 // pred_check
    %p12 = pneg %p11
  $region11: #{tpu_custom_call.1} parent=0 // pred_check_branch
    %14 = sbr.rel (%p12) target = $region13
  $region12: #{tpu_custom_call.1} parent=0 // pred_region
    %vm15 = vcmask 7168
    %16 = vst.msk [vmem:[#allocation2] sm:$0xff] %vm15, -inf
    %17 = vst.msk [vmem:[#allocation3] sm:$0xff] %vm15, 0.0
    %18 = vst.msk [vmem:[#allocation4] sm:$0xff] %vm15, 0.0
  $region13: #{tpu_custom_call.1} parent=0 // pred_fallthru
    _
  %v19 = vld [vmem:[%s0] sm:$0xff]
  %v20 = vlaneseq
  %v21 = vand.u32 %v20, 127
  %v22 = vld [vmem:[%s1] sm:$0xff]
  %s23 = smul.u32 0, 32
  %v24 = vstv %s23
  %v25 = vsub.s32 %v22, %v24
  %vm26 = vcmask 261120
  %v27 = vsel %vm26, %v19, -inf
  %28 = vmax.xlane.f32.xlu0 %v27
  %v29 = vpop.xlane.xlu0 %28
  %v30 = vld [vmem:[#allocation2] sm:$0xff]
  %v31 = vmax.f32 %v30, %v29
  %v32 = vsub.f32 %v30, %v31
  %v33 = vmul.f32 %v32, 1.442695
  %v34 = vpow.pop %v33
  %v35 = vld [vmem:[#allocation3] sm:$0xff]
  %v36 = vmul.f32 %v34, %v35
  %38 = vset.pattern.permute.xlu0 0
  %39 = vperm.xlu0 %38, %v31
  %v40 = vpop.permute.xlu0 %39
  %v42 = vsub.f32 %v19, %v40
  %v43 = vmul.f32 %v42, 1.442695
  %v44 = vpow.pop %v43
  %v45 = vsel %vm26, %v44, 0.0
  %46 = vadd.xlane.f32.xlu0 %v45
  %v47 = vpop.xlane.xlu0 %46
  %v48 = vadd.f32 %v36, %v47
  %vm49 = vcmask 7168
  %50 = vst.msk [vmem:[#allocation3] sm:$0xff] %vm49, %v48
  %51 = vst.msk [vmem:[#allocation2] sm:$0xff] %vm49, %v31
  %52 = vset.pattern.permute.xlu0 0
  %53 = vperm.xlu0 %52, %v25
  %v54 = vpop.permute.xlu0 %53
  %vm55 = vcmp.eq.s32.totalorder %v21, %v54
  %v56 = vsel %vm55, 0.903125, 0.003125
  %v57 = vld [vmem:[#allocation4] sm:$0xff]
  %v58 = vmul.f32 %v19, %v56
  %v59 = vsel %vm26, %v58, 0.0
  %60 = vadd.xlane.f32.xlu0 %v59
  %v61 = vpop.xlane.xlu0 %60
  %v62 = vadd.f32 %v57, %v61
  %63 = vst.msk [vmem:[#allocation4] sm:$0xff] %vm49, %v62
  // Predicated region
  $region14: #{tpu_custom_call.1} parent=0 // pred_check
    %p64 = pneg %p11
  $region15: #{tpu_custom_call.1} parent=0 // pred_check_branch
    %66 = sbr.rel (%p64) target = $region17
  $region16: #{tpu_custom_call.1} parent=0 // pred_region
    %v67 = vld [vmem:[#allocation2] sm:$0xff]
    %v68 = vld [vmem:[#allocation3] sm:$0xff]
    %v69 = vlog2.pop %v68
    %v70 = vmul.f32 %v69, 0.6931472
    %v71 = vadd.f32 %v67, %v70
    %v72 = vld [vmem:[#allocation4] sm:$0xff]
    %v73 = vsub.f32 %v72, %v71
    %74 = vst.msk [vmem:[%s2] sm:$0xff] %vm49, %v73
  $region17: #{tpu_custom_call.1} parent=0 // pred_fallthru
    _
  // Predicated region
  $region18: #{tpu_custom_call.1} parent=0 // pred_check
    _
  $region19: #{tpu_custom_call.1} parent=0 // pred_check_branch
    %76 = sbr.rel (0) target = $region21
  $region20: #{tpu_custom_call.1} parent=0 // pred_region
    _
  $region21: #{tpu_custom_call.1} parent=0 // pred_fallthru
    _
  // Predicated region
  $region22: #{tpu_custom_call.1} parent=0 // pred_check
    _
  $region23: #{tpu_custom_call.1} parent=0 // pred_check_branch
    %78 = sbr.rel (0) target = $region25
  $region24: #{tpu_custom_call.1} parent=0 // pred_region
    _
  $region25: #{tpu_custom_call.1} parent=0 // pred_fallthru
    _

</llo_original>
